<compile_context>
chip_gen: v5e
topology: v5e:2x2
jax: 0.10.0
libtpu: 0.0.40
codegen_flags: <defaults>
</compile_context>

<pallas_src>
import jax
import jax.numpy as jnp
from jax.experimental import pallas as pl
from jax.experimental.pallas import tpu as pltpu

_LANES = 512                       # lane-dense last dim (multiple of 128)
_TARGET_TILE_BYTES = 4 * 1024 * 1024   # ~4 MiB per buffer (dtype-aware rows)


def _round_up(n: int, m: int) -> int:
    return ((n + m - 1) // m) * m


def _loss_kernel(c_ref, x_ref, o_ref):
    # c_ref: (1, 1) f32 scalar in SMEM; x_ref/o_ref: (block_rows, _LANES) tile.
    c = c_ref[0, 0]
    x = x_ref[...].astype(jnp.float32)
    o_ref[...] = (x * c - jnp.float32(1.0)).astype(o_ref.dtype)


def _loss_2d(x2d: jax.Array, c2d: jax.Array, out_dtype) -> jax.Array:
    """Runs the kernel over a lane-dense (rows, _LANES) slab."""
    rows, lanes = int(x2d.shape[0]), int(x2d.shape[1])
    itemsize = max(jnp.dtype(x2d.dtype).itemsize, jnp.dtype(out_dtype).itemsize)

    if rows <= 16:
        # Tiny input: one full-extent block (always a legal tile shape).
        block_rows = rows
    else:
        # Dtype-aware target (~4 MiB/buffer), but at least 2 grid steps so both
        # v7x TensorCores stream concurrently; multiple of 8 keeps tiling legal.
        target_rows = max(8, _TARGET_TILE_BYTES // (lanes * itemsize))
        block_rows = int(min(target_rows, _round_up(pl.cdiv(rows, 2), 8)))

    grid = (pl.cdiv(rows, block_rows),)   # partial last block is masked by Pallas

    in_bytes = rows * lanes * jnp.dtype(x2d.dtype).itemsize
    out_bytes = rows * lanes * jnp.dtype(out_dtype).itemsize

    return pl.pallas_call(
        _loss_kernel,
        out_shape=jax.ShapeDtypeStruct((rows, lanes), out_dtype),
        grid=grid,
        in_specs=[
            # Scalar parameter: whole (1,1) array resident in SMEM.
            pl.BlockSpec(memory_space=pltpu.SMEM),
            # Streamed lane-dense input tiles (auto double-buffered).
            pl.BlockSpec((block_rows, lanes), lambda i: (i, 0)),
        ],
        out_specs=pl.BlockSpec((block_rows, lanes), lambda i: (i, 0)),
        compiler_params=pltpu.CompilerParams(
            dimension_semantics=("parallel",),
            vmem_limit_bytes=40 * 1024 * 1024,
        ),
        cost_estimate=pl.CostEstimate(
            flops=2 * rows * lanes,
            transcendentals=0,
            bytes_accessed=in_bytes + out_bytes,
        ),
    )(c2d, x2d)


def loss_forward(x: jax.Array, c: jax.Array) -> jax.Array:
    """Computes x * c - 1.0 (PyTorch `Loss.forward`) with a Pallas TPU kernel."""
    orig_shape = x.shape
    c_arr = jnp.asarray(c, jnp.float32)
    # Match torch type promotion: bf16 tensor * f32 Parameter -> f32 result.
    out_dtype = jnp.result_type(x.dtype, c_arr.dtype)
    c2d = c_arr.reshape(1, 1)

    total = int(x.size)
    if total == 0:
        return jnp.zeros(orig_shape, out_dtype)

    flat = x.reshape(-1)
    main_total = (total // _LANES) * _LANES

    pieces = []
    if main_total > 0:
        x2d = flat[:main_total].reshape(main_total // _LANES, _LANES)
        pieces.append(_loss_2d(x2d, c2d, out_dtype).reshape(-1))
    if main_total != total:
        # <=511-element ragged tail: cheaper in plain XLA than padding the
        # whole array (which would cost extra full HBM read+write passes).
        tail = flat[main_total:].astype(jnp.float32) * c_arr[0] - jnp.float32(1.0)
        pieces.append(tail.astype(out_dtype))

    out_flat = pieces[0] if len(pieces) == 1 else jnp.concatenate(pieces)
    return out_flat.reshape(orig_shape)


if __name__ == "__main__":
    key = jax.random.PRNGKey(0)

    # Deterministic parameter init matching torch.Tensor([0.1]).
    c = jnp.array([0.1], dtype=jnp.float32)

    # Small NCHW input consistent with the module interface.
    x = jax.random.normal(key, (2, 4, 16, 16), dtype=jnp.float32)
    out = jax.block_until_ready(loss_forward(x, c))
    ref = x * 0.1 - 1.0
    assert out.shape == x.shape
    assert out.dtype == jnp.float32
    assert jnp.max(jnp.abs(out - ref)) < 1e-6

    # Larger f32 input exercising the multi-block (>=2 grid steps) path.
    x_big = jax.random.normal(jax.random.PRNGKey(1), (4, 8, 64, 64),
                              dtype=jnp.float32)
    out_big = jax.block_until_ready(loss_forward(x_big, c))
    ref_big = x_big * 0.1 - 1.0
    assert jnp.max(jnp.abs(out_big - ref_big)) < 1e-6

    # Ragged, non-multiple-of-512 bf16 input (tail path + torch-style promotion).
    x_bf16 = jax.random.normal(jax.random.PRNGKey(2), (3, 5, 7, 11),
                               dtype=jnp.bfloat16)
    out_bf16 = jax.block_until_ready(loss_forward(x_bf16, c))
    ref_bf16 = x_bf16.astype(jnp.float32) * 0.1 - 1.0
    assert out_bf16.shape == x_bf16.shape
    assert out_bf16.dtype == jnp.float32   # bf16 * f32 param promotes, as in torch
    assert jnp.max(jnp.abs(out_bf16 - ref_bf16)) < 2e-2

    print("KERNEL_OK")
</pallas_src>

<mosaic_0001>
module attributes {stable_mosaic.version = 11 : i64} {
  func.func @_loss_kernel(%arg0: i32, %arg1: memref<1x1xf32, #tpu.memory_space<smem>>, %arg2: memref<4x512xf32, #tpu.memory_space<vmem>>, %arg3: memref<4x512xf32, #tpu.memory_space<vmem>>) attributes {dimension_semantics = [#tpu.dimension_semantics<parallel>], iteration_bounds = array<i64: 1>, scalar_prefetch = 0 : i64, scratch_operands = 0 : i64, tpu.core_type = #tpu.core_type<tc>, window_params = [{transform_indices = @transform_0, window_bounds = array<i64: 1, 1>}, {transform_indices = @transform_1, window_bounds = array<i64: 4, 512>}, {transform_indices = @transform_2, window_bounds = array<i64: 4, 512>}]} {
    %c0 = arith.constant 0 : index
    %c0_0 = arith.constant 0 : index
    %0 = memref.load %arg1[%c0, %c0_0] : memref<1x1xf32, #tpu.memory_space<smem>>
    %c0_1 = arith.constant 0 : index
    %c0_2 = arith.constant 0 : index
    %1 = vector.load %arg2[%c0_1, %c0_2] : memref<4x512xf32, #tpu.memory_space<vmem>>, vector<4x512xf32>
    %2 = vector.broadcast %0 : f32 to vector<4x512xf32>
    %3 = arith.mulf %1, %2 : vector<4x512xf32>
    %cst = arith.constant 1.000000e+00 : f32
    %4 = vector.broadcast %cst : f32 to vector<4x512xf32>
    %5 = arith.subf %3, %4 : vector<4x512xf32>
    %c0_3 = arith.constant 0 : index
    %c0_4 = arith.constant 0 : index
    %6 = vector.load %arg3[%c0_3, %c0_4] : memref<4x512xf32, #tpu.memory_space<vmem>>, vector<4x512xf32>
    tpu.vector_store %arg3[%c0_3, %c0_4], %5 {strides = array<i32>} : memref<4x512xf32, #tpu.memory_space<vmem>>, vector<4x512xf32>,
    return
  }
  func.func @transform_0(%arg0: i32) -> (i32, i32) {
    %c0_i32 = arith.constant 0 : i32
    %c0_i32_0 = arith.constant 0 : i32
    %c0_i32_1 = arith.constant 0 : i32
    return %c0_i32, %c0_i32_0 : i32, i32
  }
  func.func @transform_1(%arg0: i32) -> (i32, i32) {
    %c0_i32 = arith.constant 0 : i32
    %c0_i32_0 = arith.constant 0 : i32
    return %arg0, %c0_i32 : i32, i32
  }
  func.func @transform_2(%arg0: i32) -> (i32, i32) {
    %c0_i32 = arith.constant 0 : i32
    %c0_i32_0 = arith.constant 0 : i32
    return %arg0, %c0_i32 : i32, i32
  }
}

</mosaic_0001>

<llo_original>
// kernel: tpu_custom_call.1
$region0: #{tpu_custom_call.1}
  #allocation0 [shape = 'u32[]', space=smem, size = 0x4, offset = 0x4, fixed_abs, tag = 'smem constant byte address 0x4 - core index']
  #allocation1 [shape = 'u32[72,128]{1,0:T(1,128)}', space=vmem, size = 0x9000, scoped, tag = 'internal scratch']
  #allocation2 [shape = 'f32[1,1]{1,0:T(1,128)S(6)}', space=smem, size = 0x200, scoped, tag = 'scoped memory for tpu_custom_call.1']
  %s0 = inlined_call_operand.<no memory space> [shape: f32[1,1], index: 0, kind: input, shape index: {}]
  %s1 = inlined_call_operand.hbm [shape: f32[4,512], index: 1, kind: input, shape index: {}]
  %s2 = inlined_call_operand.hbm [shape: f32[4,512], index: 2, kind: output, shape index: {}]
  %s3 = sld [smem:[#allocation0]]
  $region22: #{tpu_custom_call.1} parent=0
    _
  %s5 = ssub.s32 1, %s3
  %s6 = scalar_select 0, %s5, %s3
  %7 = sst [smem:[#allocation2]] %s0
  $region1: #{tpu_custom_call.1} parent=0
    #allocation3 [shape = 'u8[8192]{0}', space=vmem, size = 0x2000, scoped, tag = 'input window, operand 1, single buffered']
    #allocation4 [shape = 's32[1]{0}', space=sflag, size = 0x4, scoped, tag = 'scoped memory for tpu_custom_call.1']
    #allocation5 [shape = 's32[1]{0}', space=sflag, size = 0x4, scoped, tag = 'scoped memory for tpu_custom_call.1']
    #allocation6 [shape = 'u8[8192]{0}', space=vmem, size = 0x2000, scoped, tag = 'output window, operand 0, single buffered']
    %8 = vsyncpa [#allocation4], 0
    %9 = vsyncpa [#allocation5], 0
    // Predicated region
    $region2: #{tpu_custom_call.1} parent=1 // pred_check
      _
    $region3: #{tpu_custom_call.1} parent=1 // pred_check_branch
      %11 = sbr.rel (0) target = $region5
    $region4: #{tpu_custom_call.1} parent=1 // pred_region
      _
    $region5: #{tpu_custom_call.1} parent=1 // pred_fallthru
      _
    // Predicated region
    $region6: #{tpu_custom_call.1} parent=1 // pred_check
      _
    $region7: #{tpu_custom_call.1} parent=1 // pred_check_branch
      %13 = sbr.rel (0) target = $region9
    $region8: #{tpu_custom_call.1} parent=1 // pred_region
      %15 = vsyncadd [#allocation4], 0
      %s17 = sshll.u32 %s1, 4
      %s18 = int_to_ptr.hbm [resolvable:$true] %s17
      %s19 = sshll.u32 [#allocation3], 4
      %s20 = int_to_ptr.vmem [resolvable:$true] %s19
      %22 = dma.hbm_to_vmem [thread:$0]  %s18, 256, %s20, [#allocation4]
    $region9: #{tpu_custom_call.1} parent=1 // pred_fallthru
      _
    // Predicated region
    $region10: #{tpu_custom_call.1} parent=1 // pred_check
      _
    $region11: #{tpu_custom_call.1} parent=1 // pred_check_branch
      %24 = sbr.rel (0) target = $region13
    $region12: #{tpu_custom_call.1} parent=1 // pred_region
      %26 = dma.done [#allocation4], 256
    $region13: #{tpu_custom_call.1} parent=1 // pred_fallthru
      _
    %s27 = sld [smem:[#allocation2]]
    %v28 = vld [vmem:[#allocation3] sm:$0xff]
    %v29 = vld [vmem:[#allocation3 + $0x8] sm:$0xff]
    %v30 = vstv %s27
    %v31 = vmul.f32 %v28, %v30
    %v32 = vmul.f32 %v29, %v30
    %v33 = vsub.f32 %v31, 1.0
    %v34 = vsub.f32 %v32, 1.0
    %35 = vst [vmem:[#allocation6] sm:$0xff] %v33
    %36 = vst [vmem:[#allocation6 + $0x8] sm:$0xff] %v34
    // Predicated region
    $region14: #{tpu_custom_call.1} parent=1 // pred_check
      _
    $region15: #{tpu_custom_call.1} parent=1 // pred_check_branch
      %38 = sbr.rel (0) target = $region17
    $region16: #{tpu_custom_call.1} parent=1 // pred_region
      %40 = vsyncadd [#allocation5], 0
      %s42 = sshll.u32 [#allocation6], 4
      %s43 = int_to_ptr.vmem [resolvable:$true] %s42
      %s44 = sshll.u32 %s2, 4
      %s45 = int_to_ptr.hbm [resolvable:$true] %s44
      %47 = dma.vmem_to_hbm [thread:$0]  %s43, 256, %s45, [#allocation5]
    $region17: #{tpu_custom_call.1} parent=1 // pred_fallthru
      _
    // Predicated region
    $region18: #{tpu_custom_call.1} parent=1 // pred_check
      _
    $region19: #{tpu_custom_call.1} parent=1 // pred_check_branch
      %49 = sbr.rel (0) target = $region21
    $region20: #{tpu_custom_call.1} parent=1 // pred_region
      %51 = dma.done [#allocation5], 256
    $region21: #{tpu_custom_call.1} parent=1 // pred_fallthru
      _
    %52 = vsyncpa [#allocation4], 1
    %53 = vsyncpa [#allocation5], 1

</llo_original>
